<compile_context>
chip_gen: v7x
topology: tpu7x:2x2x1
jax: 0.10.0
libtpu: 0.0.40
codegen_flags: <defaults>
</compile_context>

<pallas_src>
import numpy as np
import jax
import jax.numpy as jnp
from jax import lax
from jax.experimental import pallas as pl
from jax.experimental.pallas import tpu as pltpu


def _round_up(x, m):
    return ((x + m - 1) // m) * m


# ----------------------------- Pallas kernel --------------------------------

def _basic_block_kernel(x_ref, a1_ref, b1_ref, a2_ref, b2_ref, o_ref, midp_ref):
    """Fused conv1+bn1+relu -> conv2+bn2+residual+relu on one batch tile.

    Layout: the padded W axis and the channel axis are folded into the lane
    dimension, so every tensor the kernel touches is lane-dense.

    x_ref   : (nb, H+2, L)   spatially zero-padded input rows, L = Wp*C   (f32)
    a1_ref  : (3*L, Lm)      conv1 "shift" weights, bn1 scale folded (bf16/f32)
    b1_ref  : (1, Lm)        folded bn1 bias, zero at halo lanes          (f32)
    a2_ref  : (3*Lm, L)      conv2 "shift" weights, bn2 scale folded (bf16/f32)
    b2_ref  : (1, L)         folded bn2 bias, zero at halo lanes          (f32)
    o_ref   : (nb, H, L)     output rows                                  (f32)
    midp_ref: (nb, H+2, Lm)  scratch: zero-haloed conv1 output   (matmul dtype)
    """
    nb, hp, L = x_ref.shape
    H = o_ref.shape[1]
    Lm = a1_ref.shape[1]
    dt = a1_ref.dtype
    M = nb * H

    # ---- conv1 (+ folded bn1) as a single MXU matmul -------------------------
    # The three row-shifted views supply the kh taps; the kw taps are encoded in
    # a1 (block-banded along the lane axis).  Concatenating 128-lane slabs along
    # the minor axis is layout-free; K = 3*L for one dot, accumulation stays in
    # the MXU result buffer.
    lhs1 = jnp.concatenate(
        [x_ref[:, 0:H, :].astype(dt),
         x_ref[:, 1:H + 1, :].astype(dt),
         x_ref[:, 2:H + 2, :].astype(dt)],
        axis=-1).reshape(M, 3 * L)
    mid = jnp.dot(lhs1, a1_ref[...], preferred_element_type=jnp.float32)
    mid = jnp.maximum(mid + b1_ref[...], 0.0)
    # TODO(synk): training-mode Dropout(p=0.5) masking not implemented
    #             (eval mode => identity).

    # ---- stash mid in a zero-haloed scratch for conv2's kh shifts ------------
    # Invariant: rows 0 and H+1.. of midp_ref are the spatial zero halo and the
    # interior store must write exactly rows 1..H.  The halo rows are re-zeroed
    # every step (2 tiny stores), so the kernel never depends on scratch state
    # left by a previous grid step (safe if the grid axis is split across cores).
    midp_ref[:, 0:1, :] = jnp.zeros((nb, 1, Lm), dtype=midp_ref.dtype)
    midp_ref[:, H + 1:hp, :] = jnp.zeros((nb, hp - H - 1, Lm), dtype=midp_ref.dtype)
    midp_ref[:, 1:H + 1, :] = mid.reshape(nb, H, Lm).astype(midp_ref.dtype)

    # ---- conv2 (+ folded bn2) + residual + relu ------------------------------
    lhs2 = jnp.concatenate(
        [midp_ref[:, 0:H, :],
         midp_ref[:, 1:H + 1, :],
         midp_ref[:, 2:H + 2, :]],
        axis=-1).reshape(M, 3 * Lm)
    out = jnp.dot(lhs2, a2_ref[...], preferred_element_type=jnp.float32)
    res = x_ref[:, 1:H + 1, :].reshape(M, L)          # f32 residual (interior rows)
    out = jnp.maximum(out + b2_ref[...] + res, 0.0)
    o_ref[...] = out.reshape(nb, H, L).astype(o_ref.dtype)


def _basic_block_pallas(x_f, a1, b1r, a2, b2r, nb, mid_dtype):
    n_pad, hp, L = x_f.shape
    H = hp - 2
    Lm = a1.shape[1]
    grid = (n_pad // nb,)

    flops = 2 * n_pad * H * (3 * L) * Lm + 2 * n_pad * H * (3 * Lm) * L
    bytes_accessed = (
        x_f.size * x_f.dtype.itemsize
        + a1.size * a1.dtype.itemsize + a2.size * a2.dtype.itemsize
        + b1r.size * 4 + b2r.size * 4
        + n_pad * H * L * 4)

    return pl.pallas_call(
        _basic_block_kernel,
        out_shape=jax.ShapeDtypeStruct((n_pad, H, L), jnp.float32),
        grid_spec=pltpu.PrefetchScalarGridSpec(
            num_scalar_prefetch=0,
            grid=grid,
            in_specs=[
                pl.BlockSpec((nb, hp, L), lambda i: (i, 0, 0)),
                pl.BlockSpec(a1.shape, lambda i: (0, 0)),
                pl.BlockSpec(b1r.shape, lambda i: (0, 0)),
                pl.BlockSpec(a2.shape, lambda i: (0, 0)),
                pl.BlockSpec(b2r.shape, lambda i: (0, 0)),
            ],
            out_specs=pl.BlockSpec((nb, H, L), lambda i: (i, 0, 0)),
            scratch_shapes=[pltpu.VMEM((nb, hp, Lm), mid_dtype)],
        ),
        # Per-step VMEM use is ~1 MB, so the default scoped VMEM limit is ample
        # on every generation (incl. v7x's 64 MiB) -- no explicit override.
        compiler_params=pltpu.CompilerParams(
            dimension_semantics=("parallel",),
        ),
        cost_estimate=pl.CostEstimate(
            flops=flops, transcendentals=0, bytes_accessed=bytes_accessed),
    )(x_f, a1, b1r, a2, b2r)


# ------------------------------- JAX glue -----------------------------------

def _fold_bn(gamma, beta, mean, var, eps=1e-5):
    scale = gamma.astype(jnp.float32) / jnp.sqrt(var.astype(jnp.float32) + eps)
    bias = beta.astype(jnp.float32) - mean.astype(jnp.float32) * scale
    return scale, bias


def _build_shift_weights(wf, WP, W):
    """(3,3,Ci,Co) HWIO kernel -> (3*WP*Ci, WP*Co) block-banded matrix A with
       A[kh*WP*Ci + wi*Ci + ci, wo*Co + co] = wf[kh, wi-wo+1, ci, co]
    for wi-wo+1 in {0,1,2} and 1 <= wo <= W, else 0 (halo / pad columns)."""
    Ci, Co = wf.shape[2], wf.shape[3]
    S = np.zeros((3, WP, WP), np.float32)           # S[kw, w_in, w_out]
    for kw in range(3):
        for wo in range(1, W + 1):
            S[kw, wo + kw - 1, wo] = 1.0
    A = jnp.einsum('kio,hkcd->hicod', jnp.asarray(S), wf.astype(jnp.float32))
    return A.reshape(3 * WP * Ci, WP * Co)


def basic_block_forward(x_nchw, params, *, matmul_dtype=jnp.bfloat16,
                        batch_tile=32):
    """Forward pass of BasicBlock (stride=1, in_planes == planes), NCHW in/out.

    NOTE: for production the NCHW -> padded-lane-folded layout change below
    should be done once per network (or the model should feed NHWC directly);
    it is done per call here to keep the demo self-contained.
    """
    N, C, H, W = x_nchw.shape
    w1, w2 = params["w1"], params["w2"]            # HWIO
    Cmid, Cout = w1.shape[-1], w2.shape[-1]
    assert Cout == C and w1.shape[2] == C and w2.shape[2] == Cmid, \
        "BasicBlock residual requires in_planes == planes (stride=1)"

    # Padded W so the folded (W, C) lane axis is a multiple of 128 when possible
    # (W + 2 halo columns, extra columns stay zero).
    WP = W + 2
    if 128 % C == 0:
        WP = _round_up(WP, 128 // C)
    L, Lm = WP * C, WP * Cmid

    s1, b1 = _fold_bn(params["bn1_gamma"], params["bn1_beta"],
                      params["bn1_mean"], params["bn1_var"])
    s2, b2 = _fold_bn(params["bn2_gamma"], params["bn2_beta"],
                      params["bn2_mean"], params["bn2_var"])

    # Fold BN scale into the conv weights, build the per-conv shift matrices.
    w1f = w1.astype(jnp.float32) * s1[None, None, None, :]
    w2f = w2.astype(jnp.float32) * s2[None, None, None, :]
    a1 = _build_shift_weights(w1f, WP, W).astype(matmul_dtype)     # (3*L, Lm)
    a2 = _build_shift_weights(w2f, WP, W).astype(matmul_dtype)     # (3*Lm, L)

    wmask = ((jnp.arange(WP) >= 1) & (jnp.arange(WP) <= W)).astype(jnp.float32)
    b1r = (wmask[:, None] * b1[None, :]).reshape(1, Lm).astype(jnp.float32)
    b2r = (wmask[:, None] * b2[None, :]).reshape(1, L).astype(jnp.float32)

    # Batch tile: one grid step processes nb images => M = nb*H matmul rows.
    nb = max(1, min(N, batch_tile))
    n_pad = _round_up(N, nb)
    # NOTE(v7x): for large N keep n_pad // nb even so the "parallel" grid axis
    # balances across the two TensorCores.

    # NCHW -> zero-padded NHWC with (W, C) folded into the lane axis.
    x = jnp.transpose(x_nchw, (0, 2, 3, 1)).astype(jnp.float32)     # (N,H,W,C)
    x_p = jnp.pad(x, ((0, n_pad - N), (1, 1), (1, WP - W - 1), (0, 0)))
    x_f = x_p.reshape(n_pad, H + 2, L)

    out = _basic_block_pallas(x_f, a1, b1r, a2, b2r, nb, matmul_dtype)
    out = out[:N].reshape(N, H, WP, C)[:, :, 1:1 + W, :]            # (N,H,W,C)
    return jnp.transpose(out, (0, 3, 1, 2))                         # -> NCHW


# ------------------------------ reference -----------------------------------

def _reference_forward(x_nchw, params, eps=1e-5):
    x = jnp.transpose(x_nchw, (0, 2, 3, 1)).astype(jnp.float32)
    dn = ("NHWC", "HWIO", "NHWC")

    def bn(y, g, b, m, v):
        return (y - m) / jnp.sqrt(v + eps) * g + b

    out = lax.conv_general_dilated(x, params["w1"].astype(jnp.float32), (1, 1),
                                   "SAME", dimension_numbers=dn,
                                   precision=lax.Precision.HIGHEST)
    out = bn(out, params["bn1_gamma"], params["bn1_beta"],
             params["bn1_mean"], params["bn1_var"])
    out = jnp.maximum(out, 0.0)
    out = lax.conv_general_dilated(out, params["w2"].astype(jnp.float32), (1, 1),
                                   "SAME", dimension_numbers=dn,
                                   precision=lax.Precision.HIGHEST)
    out = bn(out, params["bn2_gamma"], params["bn2_beta"],
             params["bn2_mean"], params["bn2_var"])
    out = jnp.maximum(out + x, 0.0)
    return jnp.transpose(out, (0, 3, 1, 2))


# -------------------------------- main ---------------------------------------

if __name__ == "__main__":
    # maia2's BasicBlock runs on 8x8 chess boards; small channel count for demo.
    N, C, H, W = 6, 8, 8, 8
    Cmid = C

    key = jax.random.PRNGKey(0)
    k = jax.random.split(key, 8)

    x = jax.random.normal(k[0], (N, C, H, W), dtype=jnp.float32)
    params = {
        "w1": jax.random.normal(k[1], (3, 3, C, Cmid), dtype=jnp.float32) * 0.1,
        "w2": jax.random.normal(k[2], (3, 3, Cmid, C), dtype=jnp.float32) * 0.1,
        "bn1_gamma": jax.random.uniform(k[3], (Cmid,), minval=0.5, maxval=1.5),
        "bn1_beta": jax.random.normal(k[4], (Cmid,)) * 0.1,
        "bn1_mean": jax.random.normal(k[5], (Cmid,)) * 0.1,
        "bn1_var": jax.random.uniform(k[6], (Cmid,), minval=0.5, maxval=1.5),
        "bn2_gamma": jax.random.uniform(k[7], (C,), minval=0.5, maxval=1.5),
        "bn2_beta": jnp.zeros((C,), jnp.float32),
        "bn2_mean": jnp.zeros((C,), jnp.float32),
        "bn2_var": jnp.ones((C,), jnp.float32),
    }

    ref = jax.block_until_ready(_reference_forward(x, params))

    # 1) f32 MXU path, small batch tile (exercises multi-step grid + batch pad).
    #    Tolerance is kept loose enough to be robust to MXU f32 pass precision.
    out_f32 = jax.block_until_ready(
        basic_block_forward(x, params, matmul_dtype=jnp.float32, batch_tile=4))
    assert out_f32.shape == (N, C, H, W)
    assert jnp.allclose(out_f32, ref, atol=5e-2, rtol=5e-2), \
        float(jnp.max(jnp.abs(out_f32 - ref)))

    # 2) Performance path: bf16 weights / bf16 mid scratch, f32 accumulation.
    out_bf16 = jax.block_until_ready(basic_block_forward(x, params))
    assert out_bf16.shape == (N, C, H, W)
    assert jnp.allclose(out_bf16, ref, atol=5e-2, rtol=5e-2), \
        float(jnp.max(jnp.abs(out_bf16 - ref)))

    print("KERNEL_OK")
</pallas_src>

<mosaic_0001>
module attributes {stable_mosaic.version = 11 : i64} {
  func.func @_basic_block_kernel(%arg0: i32, %arg1: memref<4x10x128xf32, #tpu.memory_space<vmem>>, %arg2: memref<384x128xf32, #tpu.memory_space<vmem>>, %arg3: memref<1x128xf32, #tpu.memory_space<vmem>>, %arg4: memref<384x128xf32, #tpu.memory_space<vmem>>, %arg5: memref<1x128xf32, #tpu.memory_space<vmem>>, %arg6: memref<4x8x128xf32, #tpu.memory_space<vmem>>, %arg7: memref<4x10x128xf32, #tpu.memory_space<vmem>>) attributes {dimension_semantics = [#tpu.dimension_semantics<parallel>], iteration_bounds = array<i64: 2>, scalar_prefetch = 0 : i64, scratch_operands = 1 : i64, tpu.core_type = #tpu.core_type<tc>, window_params = [{transform_indices = @transform_0, window_bounds = array<i64: 4, 10, 128>}, {pipeline_mode = #tpu.pipeline_mode<synchronous>, transform_indices = @transform_1, window_bounds = array<i64: 384, 128>}, {pipeline_mode = #tpu.pipeline_mode<synchronous>, transform_indices = @transform_2, window_bounds = array<i64: 1, 128>}, {pipeline_mode = #tpu.pipeline_mode<synchronous>, transform_indices = @transform_3, window_bounds = array<i64: 384, 128>}, {pipeline_mode = #tpu.pipeline_mode<synchronous>, transform_indices = @transform_4, window_bounds = array<i64: 1, 128>}, {transform_indices = @transform_5, window_bounds = array<i64: 4, 8, 128>}]} {
    %c0 = arith.constant 0 : index
    %c0_0 = arith.constant 0 : index
    %c0_1 = arith.constant 0 : index
    %0 = vector.load %arg1[%c0, %c0_0, %c0_1] : memref<4x10x128xf32, #tpu.memory_space<vmem>>, vector<4x8x128xf32>
    %c0_2 = arith.constant 0 : index
    %c1 = arith.constant 1 : index
    %c0_3 = arith.constant 0 : index
    %1 = vector.load %arg1[%c0_2, %c1, %c0_3] : memref<4x10x128xf32, #tpu.memory_space<vmem>>, vector<4x8x128xf32>
    %c0_4 = arith.constant 0 : index
    %c2 = arith.constant 2 : index
    %c0_5 = arith.constant 0 : index
    %2 = vector.load %arg1[%c0_4, %c2, %c0_5] : memref<4x10x128xf32, #tpu.memory_space<vmem>>, vector<4x8x128xf32>
    %3 = tpu.concatenate %0, %1, %2 in 2 : vector<4x8x128xf32>, vector<4x8x128xf32>, vector<4x8x128xf32> -> vector<4x8x384xf32>
    %4 = vector.shape_cast %3 : vector<4x8x384xf32> to vector<32x384xf32>
    %c0_6 = arith.constant 0 : index
    %c0_7 = arith.constant 0 : index
    %5 = vector.load %arg2[%c0_6, %c0_7] : memref<384x128xf32, #tpu.memory_space<vmem>>, vector<384x128xf32>
    %cst = arith.constant dense<0.000000e+00> : vector<32x128xf32>
    %6 = tpu.matmul %4, %5, %cst {dimension_numbers = #tpu.dot_dimension_numbers<[1], [0], [0], [1], [0, 0, 1, 1], [], []>} : vector<32x384xf32>, vector<384x128xf32>, vector<32x128xf32> -> vector<32x128xf32>
    %c0_8 = arith.constant 0 : index
    %c0_9 = arith.constant 0 : index
    %7 = vector.load %arg3[%c0_8, %c0_9] : memref<1x128xf32, #tpu.memory_space<vmem>>, vector<1x128xf32>
    %8 = vector.broadcast %7 : vector<1x128xf32> to vector<32x128xf32>
    %9 = arith.addf %6, %8 : vector<32x128xf32>
    %cst_10 = arith.constant 0.000000e+00 : f32
    %10 = vector.broadcast %cst_10 : f32 to vector<32x128xf32>
    %11 = arith.maximumf %9, %10 : vector<32x128xf32>
    %cst_11 = arith.constant 0.000000e+00 : f32
    %12 = vector.broadcast %cst_11 : f32 to vector<4x1x128xf32>
    %c0_12 = arith.constant 0 : index
    %c0_13 = arith.constant 0 : index
    %c0_14 = arith.constant 0 : index
    %13 = vector.load %arg7[%c0_12, %c0_13, %c0_14] : memref<4x10x128xf32, #tpu.memory_space<vmem>>, vector<4x1x128xf32>
    tpu.vector_store %arg7[%c0_12, %c0_13, %c0_14], %12 {strides = array<i32>} : memref<4x10x128xf32, #tpu.memory_space<vmem>>, vector<4x1x128xf32>,
    %cst_15 = arith.constant 0.000000e+00 : f32
    %14 = vector.broadcast %cst_15 : f32 to vector<4x1x128xf32>
    %c0_16 = arith.constant 0 : index
    %c9 = arith.constant 9 : index
    %c0_17 = arith.constant 0 : index
    %15 = vector.load %arg7[%c0_16, %c9, %c0_17] : memref<4x10x128xf32, #tpu.memory_space<vmem>>, vector<4x1x128xf32>
    tpu.vector_store %arg7[%c0_16, %c9, %c0_17], %14 {strides = array<i32>} : memref<4x10x128xf32, #tpu.memory_space<vmem>>, vector<4x1x128xf32>,
    %16 = vector.shape_cast %11 : vector<32x128xf32> to vector<4x8x128xf32>
    %c0_18 = arith.constant 0 : index
    %c1_19 = arith.constant 1 : index
    %c0_20 = arith.constant 0 : index
    %17 = vector.load %arg7[%c0_18, %c1_19, %c0_20] : memref<4x10x128xf32, #tpu.memory_space<vmem>>, vector<4x8x128xf32>
    tpu.vector_store %arg7[%c0_18, %c1_19, %c0_20], %16 {strides = array<i32>} : memref<4x10x128xf32, #tpu.memory_space<vmem>>, vector<4x8x128xf32>,
    %c0_21 = arith.constant 0 : index
    %c0_22 = arith.constant 0 : index
    %c0_23 = arith.constant 0 : index
    %18 = vector.load %arg7[%c0_21, %c0_22, %c0_23] : memref<4x10x128xf32, #tpu.memory_space<vmem>>, vector<4x8x128xf32>
    %c0_24 = arith.constant 0 : index
    %c1_25 = arith.constant 1 : index
    %c0_26 = arith.constant 0 : index
    %19 = vector.load %arg7[%c0_24, %c1_25, %c0_26] : memref<4x10x128xf32, #tpu.memory_space<vmem>>, vector<4x8x128xf32>
    %c0_27 = arith.constant 0 : index
    %c2_28 = arith.constant 2 : index
    %c0_29 = arith.constant 0 : index
    %20 = vector.load %arg7[%c0_27, %c2_28, %c0_29] : memref<4x10x128xf32, #tpu.memory_space<vmem>>, vector<4x8x128xf32>
    %21 = tpu.concatenate %18, %19, %20 in 2 : vector<4x8x128xf32>, vector<4x8x128xf32>, vector<4x8x128xf32> -> vector<4x8x384xf32>
    %22 = vector.shape_cast %21 : vector<4x8x384xf32> to vector<32x384xf32>
    %c0_30 = arith.constant 0 : index
    %c0_31 = arith.constant 0 : index
    %23 = vector.load %arg4[%c0_30, %c0_31] : memref<384x128xf32, #tpu.memory_space<vmem>>, vector<384x128xf32>
    %cst_32 = arith.constant dense<0.000000e+00> : vector<32x128xf32>
    %24 = tpu.matmul %22, %23, %cst_32 {dimension_numbers = #tpu.dot_dimension_numbers<[1], [0], [0], [1], [0, 0, 1, 1], [], []>} : vector<32x384xf32>, vector<384x128xf32>, vector<32x128xf32> -> vector<32x128xf32>
    %c0_33 = arith.constant 0 : index
    %c1_34 = arith.constant 1 : index
    %c0_35 = arith.constant 0 : index
    %25 = vector.load %arg1[%c0_33, %c1_34, %c0_35] : memref<4x10x128xf32, #tpu.memory_space<vmem>>, vector<4x8x128xf32>
    %26 = vector.shape_cast %25 : vector<4x8x128xf32> to vector<32x128xf32>
    %c0_36 = arith.constant 0 : index
    %c0_37 = arith.constant 0 : index
    %27 = vector.load %arg5[%c0_36, %c0_37] : memref<1x128xf32, #tpu.memory_space<vmem>>, vector<1x128xf32>
    %28 = vector.broadcast %27 : vector<1x128xf32> to vector<32x128xf32>
    %29 = arith.addf %24, %28 : vector<32x128xf32>
    %30 = arith.addf %29, %26 : vector<32x128xf32>
    %cst_38 = arith.constant 0.000000e+00 : f32
    %31 = vector.broadcast %cst_38 : f32 to vector<32x128xf32>
    %32 = arith.maximumf %30, %31 : vector<32x128xf32>
    %33 = vector.shape_cast %32 : vector<32x128xf32> to vector<4x8x128xf32>
    %c0_39 = arith.constant 0 : index
    %c0_40 = arith.constant 0 : index
    %c0_41 = arith.constant 0 : index
    %34 = vector.load %arg6[%c0_39, %c0_40, %c0_41] : memref<4x8x128xf32, #tpu.memory_space<vmem>>, vector<4x8x128xf32>
    tpu.vector_store %arg6[%c0_39, %c0_40, %c0_41], %33 {strides = array<i32>} : memref<4x8x128xf32, #tpu.memory_space<vmem>>, vector<4x8x128xf32>,
    return
  }
  func.func @transform_0(%arg0: i32) -> (i32, i32, i32) {
    %c0_i32 = arith.constant 0 : i32
    %c0_i32_0 = arith.constant 0 : i32
    %c0_i32_1 = arith.constant 0 : i32
    return %arg0, %c0_i32, %c0_i32_0 : i32, i32, i32
  }
  func.func @transform_1(%arg0: i32) -> (i32, i32) {
    %c0_i32 = arith.constant 0 : i32
    %c0_i32_0 = arith.constant 0 : i32
    %c0_i32_1 = arith.constant 0 : i32
    return %c0_i32, %c0_i32_0 : i32, i32
  }
  func.func @transform_2(%arg0: i32) -> (i32, i32) {
    %c0_i32 = arith.constant 0 : i32
    %c0_i32_0 = arith.constant 0 : i32
    %c0_i32_1 = arith.constant 0 : i32
    return %c0_i32, %c0_i32_0 : i32, i32
  }
  func.func @transform_3(%arg0: i32) -> (i32, i32) {
    %c0_i32 = arith.constant 0 : i32
    %c0_i32_0 = arith.constant 0 : i32
    %c0_i32_1 = arith.constant 0 : i32
    return %c0_i32, %c0_i32_0 : i32, i32
  }
  func.func @transform_4(%arg0: i32) -> (i32, i32) {
    %c0_i32 = arith.constant 0 : i32
    %c0_i32_0 = arith.constant 0 : i32
    %c0_i32_1 = arith.constant 0 : i32
    return %c0_i32, %c0_i32_0 : i32, i32
  }
  func.func @transform_5(%arg0: i32) -> (i32, i32, i32) {
    %c0_i32 = arith.constant 0 : i32
    %c0_i32_0 = arith.constant 0 : i32
    %c0_i32_1 = arith.constant 0 : i32
    return %arg0, %c0_i32, %c0_i32_0 : i32, i32, i32
  }
}

</mosaic_0001>

<llo_original>
// kernel: tpu_custom_call.1
$region0: #{tpu_custom_call.1}
  #allocation0 [shape = 'u32[]', space=smem, size = 0x4, offset = 0x4, fixed_abs, tag = 'smem constant byte address 0x4 - core index']
  #allocation1 [shape = 'u32[144,128]{1,0:T(1,128)}', space=vmem, size = 0x12000, scoped, tag = 'internal scratch']
  #allocation2 [shape = 'f32[4,10,128]{2,1,0:T(8,128)}', space=vmem, size = 0x8000, scoped, tag = 'scratch operand']
  %s0 = inlined_call_operand.vmem [shape: f32[8,10,128], index: 0, kind: input, shape index: {}]
  %s1 = inlined_call_operand.hbm [shape: f32[384,128], index: 1, kind: input, shape index: {}]
  %s2 = inlined_call_operand.vmem [shape: f32[1,128], index: 2, kind: input, shape index: {}]
  %s3 = inlined_call_operand.hbm [shape: f32[384,128], index: 3, kind: input, shape index: {}]
  %s4 = inlined_call_operand.vmem [shape: f32[1,128], index: 4, kind: input, shape index: {}]
  %s5 = inlined_call_operand.hbm [shape: f32[8,8,128], index: 5, kind: output, shape index: {}]
  %s6 = sld [smem:[#allocation0]]
  $region61: #{tpu_custom_call.1} parent=0
    _
  %s8 = ssub.s32 1, %s6
  %s9 = scalar_select 0, %s8, %s6
  $region1: #{tpu_custom_call.1} parent=0
    #allocation3 [shape = 'u8[196608]{0}', space=vmem, size = 0x30000, scoped, tag = 'input window, operand 1, single buffered']
    #allocation4 [shape = 's32[2]{0}', space=sflag, size = 0x8, scoped, tag = 'scoped memory for tpu_custom_call.1']
    #allocation5 [shape = 's32[2]{0}', space=sflag, size = 0x8, scoped, tag = 'scoped memory for tpu_custom_call.1']
    #allocation6 [shape = 'u8[196608]{0}', space=vmem, size = 0x30000, scoped, tag = 'input window, operand 3, single buffered']
    #allocation7 [shape = 's32[1]{0}', space=sflag, size = 0x4, scoped, tag = 'scoped memory for tpu_custom_call.1']
    #allocation8 [shape = 'u8[32768]{0}', space=vmem, size = 0x8000, scoped, tag = 'output window, operand 0']
    %10 = vsyncpa [#allocation4], 0
    %11 = vsyncpa [#allocation7], 0
    %12 = vsyncpa [#allocation5], 0
    %s13 = scalar_lea.sflag [#allocation5], 1
    %14 = vsyncpa %s13, 0
    loop: start=0, step=1, limit=4
    $region2: #{tpu_custom_call.1} parent=1 // loop_pre_header
      _
    $region3: #{tpu_custom_call.1} parent=1 // loop_header
      %s16 = sphi 0, %s20
      %p17 = scmp.ge.s32.totalorder %s16, 4
      %s26 = sphi 0, %s28
      %s29 = sphi 0, %s26
      %s30 = sphi 0, %s29
      %s46 = sphi 0, %s30
      %s50 = sphi 0, %s50
      %s52 = sphi 0, %s50
      %s53 = sphi 0, %s52
      %s67 = sphi 0, %s53
      %s71 = sphi 0, %s71
      %s73 = sphi 0, %s71
      %s74 = sphi 0, %s73
      %s88 = sphi 0, %s74
      %s92 = sphi 0, %s92
      %s94 = sphi 0, %s92
      %s95 = sphi 0, %s94
      %s109 = sphi 0, %s95
      %s113 = sphi 0, %s113
      %s115 = sphi 0, %s113
      %s116 = sphi 0, %s115
      %s130 = sphi 0, %s116
      %s136 = sphi 0, %s138
      %s139 = sphi 0, %s136
      %s140 = sphi 0, %s139
      %s156 = sphi 0, %s140
    $region4: #{tpu_custom_call.1} parent=1 // loop_header_branch
      %19 = sbr.rel (%p17) target = $region8
    $region5: #{tpu_custom_call.1} parent=1 // loop_body
      %s21 = ssub.s32 %s16, 1
      %s22 = ssub.s32 %s16, 2
      %s23 = sadd.s32 %s16, 1
      %s24 = ssub.s32 %s16, %s23
      %p25 = scmp.eq.s32.totalorder %s24, 0
      %s27 = sadd.s32 %s26, 1
      %s28 = scalar_select %p25, %s26, %s27
      %p31 = pneg %p25
      %p32 = scmp.eq.s32.totalorder %s16, 1
      %p33 = por %p31, %p32
      %p34 = scmp.ne.s32.totalorder %s26, %s29
      %p35 = scmp.eq.s32.totalorder %s16, 0
      %p36 = por %p34, %p35
      %p37 = scmp.ne.s32.totalorder %s26, %s29
      %p38 = scmp.eq.s32.totalorder %s21, 1
      %p39 = por %p37, %p38
      %p40 = scmp.ne.s32.totalorder %s29, %s30
      %p41 = scmp.eq.s32.totalorder %s21, 0
      %p42 = por %p40, %p41
      %p43 = scmp.ne.s32.totalorder %s29, %s30
      %p44 = scmp.eq.s32.totalorder %s22, 1
      %p45 = por %p43, %p44
      %p47 = scmp.ne.s32.totalorder %s30, %s46
      %p48 = scmp.eq.s32.totalorder %s22, 0
      %p49 = por %p47, %p48
      %s51 = sadd.s32 %s50, 1
      %p54 = scmp.eq.s32.totalorder %s16, 1
      %p55 = scmp.ne.s32.totalorder %s50, %s52
      %p56 = scmp.eq.s32.totalorder %s16, 0
      %p57 = por %p55, %p56
      %p58 = scmp.ne.s32.totalorder %s50, %s52
      %p59 = scmp.eq.s32.totalorder %s21, 1
      %p60 = por %p58, %p59
      %p61 = scmp.ne.s32.totalorder %s52, %s53
      %p62 = scmp.eq.s32.totalorder %s21, 0
      %p63 = por %p61, %p62
      %p64 = scmp.ne.s32.totalorder %s52, %s53
      %p65 = scmp.eq.s32.totalorder %s22, 1
      %p66 = por %p64, %p65
      %p68 = scmp.ne.s32.totalorder %s53, %s67
      %p69 = scmp.eq.s32.totalorder %s22, 0
      %p70 = por %p68, %p69
      %s72 = sadd.s32 %s71, 1
      %p75 = scmp.eq.s32.totalorder %s16, 1
      %p76 = scmp.ne.s32.totalorder %s71, %s73
      %p77 = scmp.eq.s32.totalorder %s16, 0
      %p78 = por %p76, %p77
      %p79 = scmp.ne.s32.totalorder %s71, %s73
      %p80 = scmp.eq.s32.totalorder %s21, 1
      %p81 = por %p79, %p80
      %p82 = scmp.ne.s32.totalorder %s73, %s74
      %p83 = scmp.eq.s32.totalorder %s21, 0
      %p84 = por %p82, %p83
      %p85 = scmp.ne.s32.totalorder %s73, %s74
      %p86 = scmp.eq.s32.totalorder %s22, 1
      %p87 = por %p85, %p86
      %p89 = scmp.ne.s32.totalorder %s74, %s88
      %p90 = scmp.eq.s32.totalorder %s22, 0
      %p91 = por %p89, %p90
      %s93 = sadd.s32 %s92, 1
      %p96 = scmp.eq.s32.totalorder %s16, 1
      %p97 = scmp.ne.s32.totalorder %s92, %s94
      %p98 = scmp.eq.s32.totalorder %s16, 0
      %p99 = por %p97, %p98
      %p100 = scmp.ne.s32.totalorder %s92, %s94
      %p101 = scmp.eq.s32.totalorder %s21, 1
      %p102 = por %p100, %p101
      %p103 = scmp.ne.s32.totalorder %s94, %s95
      %p104 = scmp.eq.s32.totalorder %s21, 0
      %p105 = por %p103, %p104
      %p106 = scmp.ne.s32.totalorder %s94, %s95
      %p107 = scmp.eq.s32.totalorder %s22, 1
      %p108 = por %p106, %p107
      %p110 = scmp.ne.s32.totalorder %s95, %s109
      %p111 = scmp.eq.s32.totalorder %s22, 0
      %p112 = por %p110, %p111
      %s114 = sadd.s32 %s113, 1
      %p117 = scmp.eq.s32.totalorder %s16, 1
      %p118 = scmp.ne.s32.totalorder %s113, %s115
      %p119 = scmp.eq.s32.totalorder %s16, 0
      %p120 = por %p118, %p119
      %p121 = scmp.ne.s32.totalorder %s113, %s115
      %p122 = scmp.eq.s32.totalorder %s21, 1
      %p123 = por %p121, %p122
      %p124 = scmp.ne.s32.totalorder %s115, %s116
      %p125 = scmp.eq.s32.totalorder %s21, 0
      %p126 = por %p124, %p125
      %p127 = scmp.ne.s32.totalorder %s115, %s116
      %p128 = scmp.eq.s32.totalorder %s22, 1
      %p129 = por %p127, %p128
      %p131 = scmp.ne.s32.totalorder %s116, %s130
      %p132 = scmp.eq.s32.totalorder %s22, 0
      %p133 = por %p131, %p132
      %s134 = ssub.s32 %s16, %s23
      %p135 = scmp.eq.s32.totalorder %s134, 0
      %s137 = sadd.s32 %s136, 1
      %s138 = scalar_select %p135, %s136, %s137
      %p141 = pneg %p135
      %p142 = scmp.eq.s32.totalorder %s16, 1
      %p143 = por %p141, %p142
      %p144 = scmp.ne.s32.totalorder %s136, %s139
      %p145 = scmp.eq.s32.totalorder %s16, 0
      %p146 = por %p144, %p145
      %p147 = scmp.ne.s32.totalorder %s136, %s139
      %p148 = scmp.eq.s32.totalorder %s21, 1
      %p149 = por %p147, %p148
      %p150 = scmp.ne.s32.totalorder %s139, %s140
      %p151 = scmp.eq.s32.totalorder %s21, 0
      %p152 = por %p150, %p151
      %p153 = scmp.ne.s32.totalorder %s139, %s140
      %p154 = scmp.eq.s32.totalorder %s22, 1
      %p155 = por %p153, %p154
      %p157 = scmp.ne.s32.totalorder %s140, %s156
      %p158 = scmp.eq.s32.totalorder %s22, 0
      %p159 = por %p157, %p158
      %p160 = scmp.le.s32.totalorder 1, %s16
      %p161 = scmp.lt.s32.totalorder %s16, 3
      %p162 = pnand %p160, %p161
      %p163 = pneg %p162
      // Predicated region
      $region9: #{tpu_custom_call.1} parent=5 // pred_check
        _
      $region10: #{tpu_custom_call.1} parent=5 // pred_check_branch
        %165 = sbr.rel (%p162) target = $region12
      $region11: #{tpu_custom_call.1} parent=5 // pred_region
        %s166 = ssub.s32 %s16, 1
        // Predicated region
        $region13: #{tpu_custom_call.1} parent=11 // pred_check
          %p167 = pneg %p63
        $region14: #{tpu_custom_call.1} parent=11 // pred_check_branch
          %169 = sbr.rel (%p167) target = $region16
        $region15: #{tpu_custom_call.1} parent=11 // pred_region
          %s171 = ssub.s32 6144, 6144
          %172 = vsyncadd [#allocation4], %s171
          %s173 = sshll.u32 [#allocation3], 4
          %s174 = int_to_ptr.vmem [resolvable:$true] %s173
          %179 = dma.hbm_to_vmem [thread:$0]  %s1, 6144, %s174, [#allocation4], 128, 128, 8
        $region16: #{tpu_custom_call.1} parent=11 // pred_fallthru
          _
        // Predicated region
        $region17: #{tpu_custom_call.1} parent=11 // pred_check
          %p180 = pneg %p84
        $region18: #{tpu_custom_call.1} parent=11 // pred_check_branch
          %182 = sbr.rel (%p180) target = $region20
        $region19: #{tpu_custom_call.1} parent=11 // pred_region
          _
        $region20: #{tpu_custom_call.1} parent=11 // pred_fallthru
          _
        // Predicated region
        $region21: #{tpu_custom_call.1} parent=11 // pred_check
          %p183 = pneg %p105
        $region22: #{tpu_custom_call.1} parent=11 // pred_check_branch
          %185 = sbr.rel (%p183) target = $region24
        $region23: #{tpu_custom_call.1} parent=11 // pred_region
          %s187 = ssub.s32 6144, 6144
          %188 = vsyncadd [#allocation7], %s187
          %s189 = sshll.u32 [#allocation6], 4
          %s190 = int_to_ptr.vmem [resolvable:$true] %s189
          %195 = dma.hbm_to_vmem [thread:$0]  %s3, 6144, %s190, [#allocation7], 128, 128, 8
        $region24: #{tpu_custom_call.1} parent=11 // pred_fallthru
          _
        // Predicated region
        $region25: #{tpu_custom_call.1} parent=11 // pred_check
          %p196 = pneg %p126
        $region26: #{tpu_custom_call.1} parent=11 // pred_check_branch
          %198 = sbr.rel (%p196) target = $region28
        $region27: #{tpu_custom_call.1} parent=11 // pred_region
          _
        $region28: #{tpu_custom_call.1} parent=11 // pred_fallthru
          _
      $region12: #{tpu_custom_call.1} parent=5 // pred_fallthru
        _
      %p199 = scmp.lt.s32.totalorder %s16, 2
      // Predicated region
      $region29: #{tpu_custom_call.1} parent=5 // pred_check
        %p200 = pneg %p199
      $region30: #{tpu_custom_call.1} parent=5 // pred_check_branch
        %202 = sbr.rel (%p200) target = $region32
      $region31: #{tpu_custom_call.1} parent=5 // pred_region
        // Predicated region
        $region33: #{tpu_custom_call.1} parent=31 // pred_check
          %p203 = pneg %p36
        $region34: #{tpu_custom_call.1} parent=31 // pred_check_branch
          %205 = sbr.rel (%p203) target = $region36
        $region35: #{tpu_custom_call.1} parent=31 // pred_region
          %s206 = smul.u32 4, %s16
          %p207 = scmp.lt.s32.totalorder %s206, 7
          %s208 = scalar_select %p207, %s206, 7
          %s209 = smul.addr %s208, 2
          %s210 = smul.addr %s209, 8
          %s211 = scalar_lea.vmem %s0, %s210
          %s212 = smul.u32 4, %s16
        $region36: #{tpu_custom_call.1} parent=31 // pred_fallthru
          _
      $region32: #{tpu_custom_call.1} parent=5 // pred_fallthru
        _
      %p213 = scmp.le.s32.totalorder 1, %s16
      %p214 = scmp.lt.s32.totalorder %s16, 3
      %p215 = pnand %p213, %p214
      %p216 = pneg %p215
      // Predicated region
      $region37: #{tpu_custom_call.1} parent=5 // pred_check
        _
      $region38: #{tpu_custom_call.1} parent=5 // pred_check_branch
        %218 = sbr.rel (%p215) target = $region40
      $region39: #{tpu_custom_call.1} parent=5 // pred_region
        %s219 = ssub.s32 %s16, 1
        // Predicated region
        $region41: #{tpu_custom_call.1} parent=39 // pred_check
          %p220 = pneg %p63
        $region42: #{tpu_custom_call.1} parent=39 // pred_check_branch
          %222 = sbr.rel (%p220) target = $region44
        $region43: #{tpu_custom_call.1} parent=39 // pred_region
          %223 = dma.done [#allocation4], 6144
        $region44: #{tpu_custom_call.1} parent=39 // pred_fallthru
          _
        // Predicated region
        $region45: #{tpu_custom_call.1} parent=39 // pred_check
          %p224 = pneg %p105
        $region46: #{tpu_custom_call.1} parent=39 // pred_check_branch
          %226 = sbr.rel (%p224) target = $region48
        $region47: #{tpu_custom_call.1} parent=39 // pred_region
          %227 = dma.done [#allocation7], 6144
        $region48: #{tpu_custom_call.1} parent=39 // pred_fallthru
          _
        %s228 = smul.u32 4, %s21
        %p229 = scmp.lt.s32.totalorder %s228, 7
        %s230 = scalar_select %p229, %s228, 7
        %s231 = smul.addr %s230, 2
        %s232 = smul.addr %s231, 8
        %s233 = scalar_lea.vmem %s0, %s232
        %p234 = pneg %p42
        %p235 = pneg %p39
        %p236 = pneg %p63
        %p237 = pneg %p60
        %p238 = pneg %p84
        %p239 = pneg %p81
        %p240 = pneg %p105
        %p241 = pneg %p102
        %p242 = pneg %p126
        %p243 = pneg %p123
        %p244 = pneg %p152
        %p245 = pneg %p149
        %s246 = sand.u32 %s139, 1
        %s247 = scalar_lea.sflag [#allocation5], %s246
        %s248 = sand.u32 %s139, 1
        %s249 = smul.addr %s248, 32
        %s250 = scalar_lea.vmem [#allocation8], %s249
        %s251 = smul.u32 4, %s21
        %p252 = scmp.lt.s32.totalorder %s251, 7
        %s253 = scalar_select %p252, %s251, 7
        %s254 = smul.addr %s253, 2
        %s255 = smul.addr %s254, 8
        %s256 = scalar_lea.vmem %s0, %s255
        %s257 = smul.u32 4, %s21
        %s258 = smul.u32 4, %s21
        %v259 = vld [vmem:[%s256] sm:$0xff]
        %v260 = vld [vmem:[%s256 + $0x10] sm:$0xff]
        %v261 = vld [vmem:[%s256 + $0x20] sm:$0xff]
        %v262 = vld [vmem:[%s256 + $0x30] sm:$0xff]
        %v263 = vld [vmem:[%s256 + $0x1] sm:$0xff]
        %v264 = vld [vmem:[%s256 + $0x11] sm:$0xff]
        %v265 = vld [vmem:[%s256 + $0x21] sm:$0xff]
        %v266 = vld [vmem:[%s256 + $0x31] sm:$0xff]
        %v267 = vld [vmem:[%s256 + $0x2] sm:$0xff]
        %v268 = vld [vmem:[%s256 + $0x12] sm:$0xff]
        %v269 = vld [vmem:[%s256 + $0x22] sm:$0xff]
        %v270 = vld [vmem:[%s256 + $0x32] sm:$0xff]
        %v271 = vld [vmem:[#allocation3] sm:$0xff]
        %v272 = vld [vmem:[#allocation3 + $0x8] sm:$0xff]
        %v273 = vld [vmem:[#allocation3 + $0x10] sm:$0xff]
        %v274 = vld [vmem:[#allocation3 + $0x18] sm:$0xff]
        %v275 = vld [vmem:[#allocation3 + $0x20] sm:$0xff]
        %v276 = vld [vmem:[#allocation3 + $0x28] sm:$0xff]
        %v277 = vld [vmem:[#allocation3 + $0x30] sm:$0xff]
        %v278 = vld [vmem:[#allocation3 + $0x38] sm:$0xff]
        %v279 = vld [vmem:[#allocation3 + $0x40] sm:$0xff]
        %v280 = vld [vmem:[#allocation3 + $0x48] sm:$0xff]
        %v281 = vld [vmem:[#allocation3 + $0x50] sm:$0xff]
        %v282 = vld [vmem:[#allocation3 + $0x58] sm:$0xff]
        %v283 = vld [vmem:[#allocation3 + $0x60] sm:$0xff]
        %v284 = vld [vmem:[#allocation3 + $0x68] sm:$0xff]
        %v285 = vld [vmem:[#allocation3 + $0x70] sm:$0xff]
        %v286 = vld [vmem:[#allocation3 + $0x78] sm:$0xff]
        %v287 = vld [vmem:[#allocation3 + $0x80] sm:$0xff]
        %v288 = vld [vmem:[#allocation3 + $0x88] sm:$0xff]
        %v289 = vld [vmem:[#allocation3 + $0x90] sm:$0xff]
        %v290 = vld [vmem:[#allocation3 + $0x98] sm:$0xff]
        %v291 = vld [vmem:[#allocation3 + $0xa0] sm:$0xff]
        %v292 = vld [vmem:[#allocation3 + $0xa8] sm:$0xff]
        %v293 = vld [vmem:[#allocation3 + $0xb0] sm:$0xff]
        %v294 = vld [vmem:[#allocation3 + $0xb8] sm:$0xff]
        %v295 = vld [vmem:[#allocation3 + $0xc0] sm:$0xff]
        %v296 = vld [vmem:[#allocation3 + $0xc8] sm:$0xff]
        %v297 = vld [vmem:[#allocation3 + $0xd0] sm:$0xff]
        %v298 = vld [vmem:[#allocation3 + $0xd8] sm:$0xff]
        %v299 = vld [vmem:[#allocation3 + $0xe0] sm:$0xff]
        %v300 = vld [vmem:[#allocation3 + $0xe8] sm:$0xff]
        %v301 = vld [vmem:[#allocation3 + $0xf0] sm:$0xff]
        %v302 = vld [vmem:[#allocation3 + $0xf8] sm:$0xff]
        %v303 = vld [vmem:[#allocation3 + $0x100] sm:$0xff]
        %v304 = vld [vmem:[#allocation3 + $0x108] sm:$0xff]
        %v305 = vld [vmem:[#allocation3 + $0x110] sm:$0xff]
        %v306 = vld [vmem:[#allocation3 + $0x118] sm:$0xff]
        %v307 = vld [vmem:[#allocation3 + $0x120] sm:$0xff]
        %v308 = vld [vmem:[#allocation3 + $0x128] sm:$0xff]
        %v309 = vld [vmem:[#allocation3 + $0x130] sm:$0xff]
        %v310 = vld [vmem:[#allocation3 + $0x138] sm:$0xff]
        %v311 = vld [vmem:[#allocation3 + $0x140] sm:$0xff]
        %v312 = vld [vmem:[#allocation3 + $0x148] sm:$0xff]
        %v313 = vld [vmem:[#allocation3 + $0x150] sm:$0xff]
        %v314 = vld [vmem:[#allocation3 + $0x158] sm:$0xff]
        %v315 = vld [vmem:[#allocation3 + $0x160] sm:$0xff]
        %v316 = vld [vmem:[#allocation3 + $0x168] sm:$0xff]
        %v317 = vld [vmem:[#allocation3 + $0x170] sm:$0xff]
        %v318 = vld [vmem:[#allocation3 + $0x178] sm:$0xff]
        %v319 = vld [vmem:[%s2] sm:$0x1]
        %v321 = vlaneseq
        %v322 = vshrl.u32 %v321, 7
        %v323 = vsub.s32 0, %v322
        %v324 = vrot.slane %v319, %v323
        %326 = vmatprep.subr.mxu0 0.0
        %327 = vmatpush1.msra.mxu0 %v271
        %328 = vmatprep.subr.mxu0 0.0
        %329 = vmatpush1.msra.mxu0 %v272
        %330 = vmatprep.subr.mxu0 0.0
        %331 = vmatpush1.msra.mxu0 %v273
        %332 = vmatprep.subr.mxu0 0.0
        %333 = vmatpush1.msra.mxu0 %v274
        %334 = vmatprep.subr.mxu0 0.0
        %335 = vmatpush1.msra.mxu0 %v275
        %336 = vmatprep.subr.mxu0 0.0
        %337 = vmatpush1.msra.mxu0 %v276
        %338 = vmatprep.subr.mxu0 0.0
        %339 = vmatpush1.msra.mxu0 %v277
        %340 = vmatprep.subr.mxu0 0.0
        %341 = vmatpush1.msra.mxu0 %v278
        %342 = vmatprep.subr.mxu0 0.0
        %343 = vmatpush1.msra.mxu0 %v279
        %344 = vmatprep.subr.mxu0 0.0
        %345 = vmatpush1.msra.mxu0 %v280
        %346 = vmatprep.subr.mxu0 0.0
        %347 = vmatpush1.msra.mxu0 %v281
        %348 = vmatprep.subr.mxu0 0.0
        %349 = vmatpush1.msra.mxu0 %v282
        %350 = vmatprep.subr.mxu0 0.0
        %351 = vmatpush1.msra.mxu0 %v283
        %352 = vmatprep.subr.mxu0 0.0
        %353 = vmatpush1.msra.mxu0 %v284
        %354 = vmatprep.subr.mxu0 0.0
        %355 = vmatpush1.msra.mxu0 %v285
        %356 = vmatprep.subr.mxu0 0.0
        %357 = vmatpush1.msra.mxu0 %v286
        %358 = vmatprep.subr.mxu0 0.0
        %359 = vmatpush1.msra.mxu0 %v287
        %360 = vmatprep.subr.mxu0 0.0
        %361 = vmatpush1.msra.mxu0 %v288
        %362 = vmatprep.subr.mxu0 0.0
        %363 = vmatpush1.msra.mxu0 %v289
        %364 = vmatprep.subr.mxu0 0.0
        %365 = vmatpush1.msra.mxu0 %v290
        %366 = vmatprep.subr.mxu0 0.0
        %367 = vmatpush1.msra.mxu0 %v291
        %368 = vmatprep.subr.mxu0 0.0
        %369 = vmatpush1.msra.mxu0 %v292
        %370 = vmatprep.subr.mxu0 0.0
        %371 = vmatpush1.msra.mxu0 %v293
        %372 = vmatprep.subr.mxu0 0.0
        %373 = vmatpush1.msra.mxu0 %v294
        %374 = vmatprep.subr.mxu0 0.0
        %375 = vmatpush1.msra.mxu0 %v295
        %376 = vmatprep.subr.mxu0 0.0
        %377 = vmatpush1.msra.mxu0 %v296
        %378 = vmatprep.subr.mxu0 0.0
        %379 = vmatpush1.msra.mxu0 %v297
        %380 = vmatprep.subr.mxu0 0.0
        %381 = vmatpush1.msra.mxu0 %v298
        %382 = vmatprep.subr.mxu0 0.0
        %383 = vmatpush1.msra.mxu0 %v299
        %384 = vmatprep.subr.mxu0 0.0
        %385 = vmatpush1.msra.mxu0 %v300
        %386 = vmatprep.subr.mxu0 0.0
        %387 = vmatpush1.msra.mxu0 %v301
        %388 = vmatprep.subr.mxu0 0.0
        %389 = vmatpush1.msra.mxu0 %v302
        %390 = vmatprep.mubr.f32.mxu0 %v263
        %391 = vmatmul.mubr.f32.gmra.mrb[0].mxu0 %v259
        %v392 = vpop.f32.mrb[0].mxu0
        %v393 = vadd.f32 %v324, %v392
        %v394 = vpop.f32.mrb[0].mxu0
        %395 = vmatprep.mubr.f32.mxu0 %v264
        %396 = vmatmul.mubr.f32.gmra.mrb[0].mxu0 %v260
        %v397 = vpop.f32.mrb[0].mxu0
        %v398 = vadd.f32 %v324, %v397
        %v399 = vpop.f32.mrb[0].mxu0
        %400 = vmatprep.mubr.f32.mxu0 %v265
        %401 = vmatmul.mubr.f32.gmra.mrb[0].mxu0 %v261
        %v402 = vpop.f32.mrb[0].mxu0
        %v403 = vadd.f32 %v324, %v402
        %v404 = vpop.f32.mrb[0].mxu0
        %405 = vmatprep.mubr.f32.mxu0 %v266
        %406 = vmatmul.mubr.f32.gmra.mrb[0].mxu0 %v262
        %v407 = vpop.f32.mrb[0].mxu0
        %v408 = vadd.f32 %v324, %v407
        %v409 = vpop.f32.mrb[0].mxu0
        %410 = vdwg.mxu0
        %411 = vmatprep.subr.mxu0 0.0
        %412 = vmatpush1.msra.mxu0 %v303
        %413 = vmatprep.subr.mxu0 0.0
        %414 = vmatpush1.msra.mxu0 %v304
        %415 = vmatprep.subr.mxu0 0.0
        %416 = vmatpush1.msra.mxu0 %v305
        %417 = vmatprep.subr.mxu0 0.0
        %418 = vmatpush1.msra.mxu0 %v306
        %419 = vmatprep.subr.mxu0 0.0
        %420 = vmatpush1.msra.mxu0 %v307
        %421 = vmatprep.subr.mxu0 0.0
        %422 = vmatpush1.msra.mxu0 %v308
        %423 = vmatprep.subr.mxu0 0.0
        %424 = vmatpush1.msra.mxu0 %v309
        %425 = vmatprep.subr.mxu0 0.0
        %426 = vmatpush1.msra.mxu0 %v310
        %427 = vmatprep.subr.mxu0 0.0
        %428 = vmatpush1.msra.mxu0 %v311
        %429 = vmatprep.subr.mxu0 0.0
        %430 = vmatpush1.msra.mxu0 %v312
        %431 = vmatprep.subr.mxu0 0.0
        %432 = vmatpush1.msra.mxu0 %v313
        %433 = vmatprep.subr.mxu0 0.0
        %434 = vmatpush1.msra.mxu0 %v314
        %435 = vmatprep.subr.mxu0 0.0
        %436 = vmatpush1.msra.mxu0 %v315
        %437 = vmatprep.subr.mxu0 0.0
        %438 = vmatpush1.msra.mxu0 %v316
        %439 = vmatprep.subr.mxu0 0.0
        %440 = vmatpush1.msra.mxu0 %v317
        %441 = vmatprep.subr.mxu0 0.0
        %442 = vmatpush1.msra.mxu0 %v318
        %443 = vmatprep.subr.mxu0 0.0
        %444 = vmatpush1.msra.mxu0 0.0
        %445 = vmatprep.subr.mxu0 0.0
        %446 = vmatpush1.msra.mxu0 0.0
        %447 = vmatprep.subr.mxu0 0.0
        %448 = vmatpush1.msra.mxu0 0.0
        %449 = vmatprep.subr.mxu0 0.0
        %450 = vmatpush1.msra.mxu0 0.0
        %451 = vmatprep.subr.mxu0 0.0
        %452 = vmatpush1.msra.mxu0 0.0
        %453 = vmatprep.subr.mxu0 0.0
        %454 = vmatpush1.msra.mxu0 0.0
        %455 = vmatprep.subr.mxu0 0.0
        %456 = vmatpush1.msra.mxu0 0.0
        %457 = vmatprep.subr.mxu0 0.0
        %458 = vmatpush1.msra.mxu0 0.0
        %459 = vmatprep.subr.mxu0 0.0
        %460 = vmatpush1.msra.mxu0 0.0
        %461 = vmatprep.subr.mxu0 0.0
        %462 = vmatpush1.msra.mxu0 0.0
        %463 = vmatprep.subr.mxu0 0.0
        %464 = vmatpush1.msra.mxu0 0.0
        %465 = vmatprep.subr.mxu0 0.0
        %466 = vmatpush1.msra.mxu0 0.0
        %467 = vmatprep.subr.mxu0 0.0
        %468 = vmatpush1.msra.mxu0 0.0
        %469 = vmatprep.subr.mxu0 0.0
        %470 = vmatpush1.msra.mxu0 0.0
        %471 = vmatprep.subr.mxu0 0.0
        %472 = vmatpush1.msra.mxu0 0.0
        %473 = vmatprep.subr.mxu0 0.0
        %474 = vmatpush1.msra.mxu0 0.0
        %475 = vmatprep.mubr.f32.mxu0 0.0
        %476 = vmatmul.mubr.f32.gmra.mrb[0].mxu0 %v267
        %v477 = vpop.f32.mrb[0].mxu0
        %v478 = vadd.f32 %v393, %v477
        %v479 = vpop.f32.mrb[0].mxu0
        %480 = vmatprep.mubr.f32.mxu0 0.0
        %481 = vmatmul.mubr.f32.gmra.mrb[0].mxu0 %v268
        %v482 = vpop.f32.mrb[0].mxu0
        %v483 = vadd.f32 %v398, %v482
        %v484 = vpop.f32.mrb[0].mxu0
        %485 = vmatprep.mubr.f32.mxu0 0.0
        %486 = vmatmul.mubr.f32.gmra.mrb[0].mxu0 %v269
        %v487 = vpop.f32.mrb[0].mxu0
        %v488 = vadd.f32 %v403, %v487
        %v489 = vpop.f32.mrb[0].mxu0
        %490 = vmatprep.mubr.f32.mxu0 0.0
        %491 = vmatmul.mubr.f32.gmra.mrb[0].mxu0 %v270
        %v492 = vpop.f32.mrb[0].mxu0
        %v493 = vadd.f32 %v408, %v492
        %v494 = vpop.f32.mrb[0].mxu0
        %495 = vdwg.mxu0
        %v496 = vmax.f32 %v478, 0.0
        %v497 = vmax.f32 %v483, 0.0
        %v498 = vmax.f32 %v488, 0.0
        %v499 = vmax.f32 %v493, 0.0
        %500 = vst [vmem:[#allocation2] sm:$0x1] 0.0
        %501 = vst [vmem:[#allocation2 + $0x10] sm:$0x1] 0.0
        %502 = vst [vmem:[#allocation2 + $0x20] sm:$0x1] 0.0
        %503 = vst [vmem:[#allocation2 + $0x30] sm:$0x1] 0.0
        %504 = vst [vmem:[#allocation2 + $0x9] sm:$0x1] 0.0
        %505 = vst [vmem:[#allocation2 + $0x19] sm:$0x1] 0.0
        %506 = vst [vmem:[#allocation2 + $0x29] sm:$0x1] 0.0
        %507 = vst [vmem:[#allocation2 + $0x39] sm:$0x1] 0.0
        %508 = vst [vmem:[#allocation2 + $0x1] sm:$0xff] %v496
        %509 = vst [vmem:[#allocation2 + $0x11] sm:$0xff] %v497
        %510 = vst [vmem:[#allocation2 + $0x21] sm:$0xff] %v498
        %511 = vst [vmem:[#allocation2 + $0x31] sm:$0xff] %v499
        %v512 = vld [vmem:[#allocation2] sm:$0xff]
        %v513 = vld [vmem:[#allocation2 + $0x10] sm:$0xff]
        %v514 = vld [vmem:[#allocation2 + $0x20] sm:$0xff]
        %v515 = vld [vmem:[#allocation2 + $0x30] sm:$0xff]
        %v516 = vld [vmem:[#allocation2 + $0x1] sm:$0xff]
        %v517 = vld [vmem:[#allocation2 + $0x11] sm:$0xff]
        %v518 = vld [vmem:[#allocation2 + $0x21] sm:$0xff]
        %v519 = vld [vmem:[#allocation2 + $0x31] sm:$0xff]
        %v520 = vld [vmem:[#allocation2 + $0x2] sm:$0xff]
        %v521 = vld [vmem:[#allocation2 + $0x12] sm:$0xff]
        %v522 = vld [vmem:[#allocation2 + $0x22] sm:$0xff]
        %v523 = vld [vmem:[#allocation2 + $0x32] sm:$0xff]
        %v524 = vld [vmem:[#allocation6] sm:$0xff]
        %v525 = vld [vmem:[#allocation6 + $0x8] sm:$0xff]
        %v526 = vld [vmem:[#allocation6 + $0x10] sm:$0xff]
        %v527 = vld [vmem:[#allocation6 + $0x18] sm:$0xff]
        %v528 = vld [vmem:[#allocation6 + $0x20] sm:$0xff]
        %v529 = vld [vmem:[#allocation6 + $0x28] sm:$0xff]
        %v530 = vld [vmem:[#allocation6 + $0x30] sm:$0xff]
        %v531 = vld [vmem:[#allocation6 + $0x38] sm:$0xff]
        %v532 = vld [vmem:[#allocation6 + $0x40] sm:$0xff]
        %v533 = vld [vmem:[#allocation6 + $0x48] sm:$0xff]
        %v534 = vld [vmem:[#allocation6 + $0x50] sm:$0xff]
        %v535 = vld [vmem:[#allocation6 + $0x58] sm:$0xff]
        %v536 = vld [vmem:[#allocation6 + $0x60] sm:$0xff]
        %v537 = vld [vmem:[#allocation6 + $0x68] sm:$0xff]
        %v538 = vld [vmem:[#allocation6 + $0x70] sm:$0xff]
        %v539 = vld [vmem:[#allocation6 + $0x78] sm:$0xff]
        %v540 = vld [vmem:[#allocation6 + $0x80] sm:$0xff]
        %v541 = vld [vmem:[#allocation6 + $0x88] sm:$0xff]
        %v542 = vld [vmem:[#allocation6 + $0x90] sm:$0xff]
        %v543 = vld [vmem:[#allocation6 + $0x98] sm:$0xff]
        %v544 = vld [vmem:[#allocation6 + $0xa0] sm:$0xff]
        %v545 = vld [vmem:[#allocation6 + $0xa8] sm:$0xff]
        %v546 = vld [vmem:[#allocation6 + $0xb0] sm:$0xff]
        %v547 = vld [vmem:[#allocation6 + $0xb8] sm:$0xff]
        %v548 = vld [vmem:[#allocation6 + $0xc0] sm:$0xff]
        %v549 = vld [vmem:[#allocation6 + $0xc8] sm:$0xff]
        %v550 = vld [vmem:[#allocation6 + $0xd0] sm:$0xff]
        %v551 = vld [vmem:[#allocation6 + $0xd8] sm:$0xff]
        %v552 = vld [vmem:[#allocation6 + $0xe0] sm:$0xff]
        %v553 = vld [vmem:[#allocation6 + $0xe8] sm:$0xff]
        %v554 = vld [vmem:[#allocation6 + $0xf0] sm:$0xff]
        %v555 = vld [vmem:[#allocation6 + $0xf8] sm:$0xff]
        %v556 = vld [vmem:[#allocation6 + $0x100] sm:$0xff]
        %v557 = vld [vmem:[#allocation6 + $0x108] sm:$0xff]
        %v558 = vld [vmem:[#allocation6 + $0x110] sm:$0xff]
        %v559 = vld [vmem:[#allocation6 + $0x118] sm:$0xff]
        %v560 = vld [vmem:[#allocation6 + $0x120] sm:$0xff]
        %v561 = vld [vmem:[#allocation6 + $0x128] sm:$0xff]
        %v562 = vld [vmem:[#allocation6 + $0x130] sm:$0xff]
        %v563 = vld [vmem:[#allocation6 + $0x138] sm:$0xff]
        %v564 = vld [vmem:[#allocation6 + $0x140] sm:$0xff]
        %v565 = vld [vmem:[#allocation6 + $0x148] sm:$0xff]
        %v566 = vld [vmem:[#allocation6 + $0x150] sm:$0xff]
        %v567 = vld [vmem:[#allocation6 + $0x158] sm:$0xff]
        %v568 = vld [vmem:[#allocation6 + $0x160] sm:$0xff]
        %v569 = vld [vmem:[#allocation6 + $0x168] sm:$0xff]
        %v570 = vld [vmem:[#allocation6 + $0x170] sm:$0xff]
        %v571 = vld [vmem:[#allocation6 + $0x178] sm:$0xff]
        %v572 = vld [vmem:[%s256 + $0x1] sm:$0xff]
        %v573 = vld [vmem:[%s256 + $0x11] sm:$0xff]
        %v574 = vld [vmem:[%s256 + $0x21] sm:$0xff]
        %v575 = vld [vmem:[%s256 + $0x31] sm:$0xff]
        %v576 = vld [vmem:[%s4] sm:$0x1]
        %v578 = vlaneseq
        %v579 = vshrl.u32 %v578, 7
        %v580 = vsub.s32 0, %v579
        %v581 = vrot.slane %v576, %v580
        %583 = vmatprep.subr.mxu0 0.0
        %584 = vmatpush1.msra.mxu0 %v524
        %585 = vmatprep.subr.mxu0 0.0
        %586 = vmatpush1.msra.mxu0 %v525
        %587 = vmatprep.subr.mxu0 0.0
        %588 = vmatpush1.msra.mxu0 %v526
        %589 = vmatprep.subr.mxu0 0.0
        %590 = vmatpush1.msra.mxu0 %v527
        %591 = vmatprep.subr.mxu0 0.0
        %592 = vmatpush1.msra.mxu0 %v528
        %593 = vmatprep.subr.mxu0 0.0
        %594 = vmatpush1.msra.mxu0 %v529
        %595 = vmatprep.subr.mxu0 0.0
        %596 = vmatpush1.msra.mxu0 %v530
        %597 = vmatprep.subr.mxu0 0.0
        %598 = vmatpush1.msra.mxu0 %v531
        %599 = vmatprep.subr.mxu0 0.0
        %600 = vmatpush1.msra.mxu0 %v532
        %601 = vmatprep.subr.mxu0 0.0
        %602 = vmatpush1.msra.mxu0 %v533
        %603 = vmatprep.subr.mxu0 0.0
        %604 = vmatpush1.msra.mxu0 %v534
        %605 = vmatprep.subr.mxu0 0.0
        %606 = vmatpush1.msra.mxu0 %v535
        %607 = vmatprep.subr.mxu0 0.0
        %608 = vmatpush1.msra.mxu0 %v536
        %609 = vmatprep.subr.mxu0 0.0
        %610 = vmatpush1.msra.mxu0 %v537
        %611 = vmatprep.subr.mxu0 0.0
        %612 = vmatpush1.msra.mxu0 %v538
        %613 = vmatprep.subr.mxu0 0.0
        %614 = vmatpush1.msra.mxu0 %v539
        %615 = vmatprep.subr.mxu0 0.0
        %616 = vmatpush1.msra.mxu0 %v540
        %617 = vmatprep.subr.mxu0 0.0
        %618 = vmatpush1.msra.mxu0 %v541
        %619 = vmatprep.subr.mxu0 0.0
        %620 = vmatpush1.msra.mxu0 %v542
        %621 = vmatprep.subr.mxu0 0.0
        %622 = vmatpush1.msra.mxu0 %v543
        %623 = vmatprep.subr.mxu0 0.0
        %624 = vmatpush1.msra.mxu0 %v544
        %625 = vmatprep.subr.mxu0 0.0
        %626 = vmatpush1.msra.mxu0 %v545
        %627 = vmatprep.subr.mxu0 0.0
        %628 = vmatpush1.msra.mxu0 %v546
        %629 = vmatprep.subr.mxu0 0.0
        %630 = vmatpush1.msra.mxu0 %v547
        %631 = vmatprep.subr.mxu0 0.0
        %632 = vmatpush1.msra.mxu0 %v548
        %633 = vmatprep.subr.mxu0 0.0
        %634 = vmatpush1.msra.mxu0 %v549
        %635 = vmatprep.subr.mxu0 0.0
        %636 = vmatpush1.msra.mxu0 %v550
        %637 = vmatprep.subr.mxu0 0.0
        %638 = vmatpush1.msra.mxu0 %v551
        %639 = vmatprep.subr.mxu0 0.0
        %640 = vmatpush1.msra.mxu0 %v552
        %641 = vmatprep.subr.mxu0 0.0
        %642 = vmatpush1.msra.mxu0 %v553
        %643 = vmatprep.subr.mxu0 0.0
        %644 = vmatpush1.msra.mxu0 %v554
        %645 = vmatprep.subr.mxu0 0.0
        %646 = vmatpush1.msra.mxu0 %v555
        %647 = vmatprep.mubr.f32.mxu0 %v516
        %648 = vmatmul.mubr.f32.gmra.mrb[0].mxu0 %v512
        %v649 = vpop.f32.mrb[0].mxu0
        %v650 = vadd.f32 %v581, %v649
        %v651 = vpop.f32.mrb[0].mxu0
        %652 = vmatprep.mubr.f32.mxu0 %v517
        %653 = vmatmul.mubr.f32.gmra.mrb[0].mxu0 %v513
        %v654 = vpop.f32.mrb[0].mxu0
        %v655 = vadd.f32 %v581, %v654
        %v656 = vpop.f32.mrb[0].mxu0
        %657 = vmatprep.mubr.f32.mxu0 %v518
        %658 = vmatmul.mubr.f32.gmra.mrb[0].mxu0 %v514
        %v659 = vpop.f32.mrb[0].mxu0
        %v660 = vadd.f32 %v581, %v659
        %v661 = vpop.f32.mrb[0].mxu0
        %662 = vmatprep.mubr.f32.mxu0 %v519
        %663 = vmatmul.mubr.f32.gmra.mrb[0].mxu0 %v515
        %v664 = vpop.f32.mrb[0].mxu0
        %v665 = vadd.f32 %v581, %v664
        %v666 = vpop.f32.mrb[0].mxu0
        %667 = vdwg.mxu0
        %668 = vmatprep.subr.mxu0 0.0
        %669 = vmatpush1.msra.mxu0 %v556
        %670 = vmatprep.subr.mxu0 0.0
        %671 = vmatpush1.msra.mxu0 %v557
        %672 = vmatprep.subr.mxu0 0.0
        %673 = vmatpush1.msra.mxu0 %v558
        %674 = vmatprep.subr.mxu0 0.0
        %675 = vmatpush1.msra.mxu0 %v559
        %676 = vmatprep.subr.mxu0 0.0
        %677 = vmatpush1.msra.mxu0 %v560
        %678 = vmatprep.subr.mxu0 0.0
        %679 = vmatpush1.msra.mxu0 %v561
        %680 = vmatprep.subr.mxu0 0.0
        %681 = vmatpush1.msra.mxu0 %v562
        %682 = vmatprep.subr.mxu0 0.0
        %683 = vmatpush1.msra.mxu0 %v563
        %684 = vmatprep.subr.mxu0 0.0
        %685 = vmatpush1.msra.mxu0 %v564
        %686 = vmatprep.subr.mxu0 0.0
        %687 = vmatpush1.msra.mxu0 %v565
        %688 = vmatprep.subr.mxu0 0.0
        %689 = vmatpush1.msra.mxu0 %v566
        %690 = vmatprep.subr.mxu0 0.0
        %691 = vmatpush1.msra.mxu0 %v567
        %692 = vmatprep.subr.mxu0 0.0
        %693 = vmatpush1.msra.mxu0 %v568
        %694 = vmatprep.subr.mxu0 0.0
        %695 = vmatpush1.msra.mxu0 %v569
        %696 = vmatprep.subr.mxu0 0.0
        %697 = vmatpush1.msra.mxu0 %v570
        %698 = vmatprep.subr.mxu0 0.0
        %699 = vmatpush1.msra.mxu0 %v571
        %700 = vmatprep.subr.mxu0 0.0
        %701 = vmatpush1.msra.mxu0 0.0
        %702 = vmatprep.subr.mxu0 0.0
        %703 = vmatpush1.msra.mxu0 0.0
        %704 = vmatprep.subr.mxu0 0.0
        %705 = vmatpush1.msra.mxu0 0.0
        %706 = vmatprep.subr.mxu0 0.0
        %707 = vmatpush1.msra.mxu0 0.0
        %708 = vmatprep.subr.mxu0 0.0
        %709 = vmatpush1.msra.mxu0 0.0
        %710 = vmatprep.subr.mxu0 0.0
        %711 = vmatpush1.msra.mxu0 0.0
        %712 = vmatprep.subr.mxu0 0.0
        %713 = vmatpush1.msra.mxu0 0.0
        %714 = vmatprep.subr.mxu0 0.0
        %715 = vmatpush1.msra.mxu0 0.0
        %716 = vmatprep.subr.mxu0 0.0
        %717 = vmatpush1.msra.mxu0 0.0
        %718 = vmatprep.subr.mxu0 0.0
        %719 = vmatpush1.msra.mxu0 0.0
        %720 = vmatprep.subr.mxu0 0.0
        %721 = vmatpush1.msra.mxu0 0.0
        %722 = vmatprep.subr.mxu0 0.0
        %723 = vmatpush1.msra.mxu0 0.0
        %724 = vmatprep.subr.mxu0 0.0
        %725 = vmatpush1.msra.mxu0 0.0
        %726 = vmatprep.subr.mxu0 0.0
        %727 = vmatpush1.msra.mxu0 0.0
        %728 = vmatprep.subr.mxu0 0.0
        %729 = vmatpush1.msra.mxu0 0.0
        %730 = vmatprep.subr.mxu0 0.0
        %731 = vmatpush1.msra.mxu0 0.0
        %732 = vmatprep.mubr.f32.mxu0 0.0
        %733 = vmatmul.mubr.f32.gmra.mrb[0].mxu0 %v520
        %v734 = vpop.f32.mrb[0].mxu0
        %v735 = vadd.f32 %v650, %v734
        %v736 = vpop.f32.mrb[0].mxu0
        %737 = vmatprep.mubr.f32.mxu0 0.0
        %738 = vmatmul.mubr.f32.gmra.mrb[0].mxu0 %v521
        %v739 = vpop.f32.mrb[0].mxu0
        %v740 = vadd.f32 %v655, %v739
        %v741 = vpop.f32.mrb[0].mxu0
        %742 = vmatprep.mubr.f32.mxu0 0.0
        %743 = vmatmul.mubr.f32.gmra.mrb[0].mxu0 %v522
        %v744 = vpop.f32.mrb[0].mxu0
        %v745 = vadd.f32 %v660, %v744
        %v746 = vpop.f32.mrb[0].mxu0
        %747 = vmatprep.mubr.f32.mxu0 0.0
        %748 = vmatmul.mubr.f32.gmra.mrb[0].mxu0 %v523
        %v749 = vpop.f32.mrb[0].mxu0
        %v750 = vadd.f32 %v665, %v749
        %v751 = vpop.f32.mrb[0].mxu0
        %752 = vdwg.mxu0
        %v753 = vadd.f32 %v735, %v572
        %v754 = vadd.f32 %v740, %v573
        %v755 = vadd.f32 %v745, %v574
        %v756 = vadd.f32 %v750, %v575
        %v757 = vmax.f32 %v753, 0.0
        %v758 = vmax.f32 %v754, 0.0
        %v759 = vmax.f32 %v755, 0.0
        %v760 = vmax.f32 %v756, 0.0
        %761 = vst [vmem:[%s250] sm:$0xff] %v757
        %762 = vst [vmem:[%s250 + $0x8] sm:$0xff] %v758
        %763 = vst [vmem:[%s250 + $0x10] sm:$0xff] %v759
        %764 = vst [vmem:[%s250 + $0x18] sm:$0xff] %v760
        %s765 = sand.u32 %s139, 1
        %s766 = scalar_lea.sflag [#allocation5], %s765
        %s767 = sand.u32 %s139, 1
        %s768 = smul.addr %s767, 32
        %s769 = scalar_lea.vmem [#allocation8], %s768
        // Predicated region
        $region49: #{tpu_custom_call.1} parent=39 // pred_check
          %p770 = pneg %p149
        $region50: #{tpu_custom_call.1} parent=39 // pred_check_branch
          %772 = sbr.rel (%p770) target = $region52
        $region51: #{tpu_custom_call.1} parent=39 // pred_region
          %s773 = smul.u32 4, %s21
          %s775 = ssub.s32 512, 512
          %776 = vsyncadd %s766, %s775
          %s777 = smul.addr %s773, 128
          %s778 = scalar_lea.hbm %s5, %s777
          %s779 = sshll.u32 %s769, 4
          %s780 = int_to_ptr.vmem [resolvable:$true] %s779
          %785 = dma.vmem_to_hbm [thread:$0]  %s780, 512, %s778, %s766, 128, 128, 8
        $region52: #{tpu_custom_call.1} parent=39 // pred_fallthru
          _
      $region40: #{tpu_custom_call.1} parent=5 // pred_fallthru
        _
      %p786 = scmp.le.s32.totalorder 2, %s16
      // Predicated region
      $region53: #{tpu_custom_call.1} parent=5 // pred_check
        %p787 = pneg %p786
      $region54: #{tpu_custom_call.1} parent=5 // pred_check_branch
        %789 = sbr.rel (%p787) target = $region56
      $region55: #{tpu_custom_call.1} parent=5 // pred_region
        %s790 = ssub.s32 %s16, 2
        // Predicated region
        $region57: #{tpu_custom_call.1} parent=55 // pred_check
          %p791 = pneg %p155
        $region58: #{tpu_custom_call.1} parent=55 // pred_check_branch
          %793 = sbr.rel (%p791) target = $region60
        $region59: #{tpu_custom_call.1} parent=55 // pred_region
          %s794 = sand.u32 %s140, 1
          %s795 = scalar_lea.sflag [#allocation5], %s794
          %s796 = sand.u32 %s140, 1
          %s797 = smul.addr %s796, 32
          %s798 = scalar_lea.vmem [#allocation8], %s797
          %799 = dma.done %s795, 512
        $region60: #{tpu_custom_call.1} parent=55 // pred_fallthru
          _
      $region56: #{tpu_custom_call.1} parent=5 // pred_fallthru
        _
    $region6: #{tpu_custom_call.1} parent=1 // loop_footer
      %s20 = sadd.s32 1, %s16
    $region7: #{tpu_custom_call.1} parent=1 // loop_footer_branch
      %15 = sbr.rel target = $region3
    $region8: #{tpu_custom_call.1} parent=1 // loop_exit
      _
    %800 = vsyncpa [#allocation4], 1
    %s801 = scalar_lea.sflag [#allocation4], 1
    %802 = vsyncpa %s801, 1
    %803 = vsyncpa [#allocation7], 1
    %804 = vsyncpa [#allocation5], 1
    %s805 = scalar_lea.sflag [#allocation5], 1
    %806 = vsyncpa %s805, 1

</llo_original>
